<compile_context>
chip_gen: v6e
topology: v6e:2x2x1
jax: 0.10.0
libtpu: 0.0.40
codegen_flags: <defaults>
</compile_context>

<pallas_src>
import numpy as np

import jax
import jax.numpy as jnp
from jax import lax
from jax.experimental import pallas as pl
from jax.experimental.pallas import tpu as pltpu


# ----------------------------- configuration -----------------------------
B = 2            # batch
N = 8            # sequence length
DIM = 32         # model dim
HEADS = 2        # heads
DIM_HEAD = 16    # per-head dim
INNER = HEADS * DIM_HEAD          # 32
BN = B * N                        # 16 fused rows
OUT_PAD = 128                     # lane-dense padded output width (>= DIM)
SCALE = DIM_HEAD ** (-0.5)
# project_out = not (heads == 1 and dim_head == dim)  -> True here

# Block-diagonal batch mask (row i may only attend to row j of the same batch
# element; rows are ordered b*N + n).  Fully static -> numpy, built once.
_row_batch = np.arange(BN) // N
_BIAS_NP = np.where(_row_batch[:, None] == _row_batch[None, :],
                    0.0, -1e30).astype(np.float32)


# ------------------------------- kernel ----------------------------------
def attention_kernel(x_ref, wqkv_ref, wout_ref, bout_ref, bias_ref, o_ref):
    # x_ref   : (BN, DIM)        f32    all batch rows, flattened
    # wqkv_ref: (DIM, 3*INNER)   bf16   qkv projection, scale folded into q cols
    # wout_ref: (INNER, OUT_PAD) bf16   output projection, zero-padded to 128 lanes
    # bout_ref: (1, OUT_PAD)     f32    to_out bias, zero-padded
    # bias_ref: (BN, BN)         f32    block-diagonal batch mask (0 / -1e30)
    # o_ref   : (BN, OUT_PAD)    bf16
    x_bf = x_ref[...].astype(jnp.bfloat16)

    # One projection matmul for the whole batch (M = BN = 16 rows), bf16
    # operands, f32 accumulation.  Single bulk cast of the result back to bf16
    # so every subsequent MXU operand is already bf16.
    qkv = jnp.dot(x_bf, wqkv_ref[...],
                  preferred_element_type=jnp.float32)         # (BN, 3*INNER) f32
    qkv_bf = qkv.astype(jnp.bfloat16)

    bias = bias_ref[...]                                      # (BN, BN) f32

    head_outs = []
    for h in range(HEADS):                                    # static unroll
        lo = h * DIM_HEAD
        qh = qkv_bf[:, 0 * INNER + lo: 0 * INNER + lo + DIM_HEAD]   # (BN, DIM_HEAD)
        kh = qkv_bf[:, 1 * INNER + lo: 1 * INNER + lo + DIM_HEAD]
        vh = qkv_bf[:, 2 * INNER + lo: 2 * INNER + lo + DIM_HEAD]

        # q @ k^T via last-dim contraction (no explicit transpose of k); the
        # attention scale is already folded into the q columns of W_qkv.
        dots = lax.dot_general(qh, kh, (((1,), (1,)), ((), ())),
                               preferred_element_type=jnp.float32) + bias  # (BN, BN)

        # numerically stable softmax in f32; denominator via EUP reciprocal
        m = jnp.max(dots, axis=-1, keepdims=True)
        e = jnp.exp(dots - m)
        attn = e * pl.reciprocal(jnp.sum(e, axis=-1, keepdims=True), approx=True)

        head_outs.append(
            jnp.dot(attn.astype(jnp.bfloat16), vh,
                    preferred_element_type=jnp.float32))      # (BN, DIM_HEAD) f32

    # Merge both heads into one K=32 output-projection matmul (single MXU
    # push against the 128-lane padded W_out), add the bias in the epilogue
    # and emit a single unmasked 128-lane-wide bf16 store.
    heads_cat = jnp.concatenate(head_outs, axis=-1).astype(jnp.bfloat16)   # (BN, INNER)
    out = jnp.dot(heads_cat, wout_ref[...],
                  preferred_element_type=jnp.float32) + bout_ref[...]      # (BN, OUT_PAD)
    o_ref[...] = out.astype(jnp.bfloat16)


# ------------------------------- wrapper ----------------------------------
def prepare_params(w_qkv, w_out, b_out):
    """One-time weight prep (hoisted out of the per-call path).

    Weights use PyTorch nn.Linear layout (out_features, in_features); we
    pre-transpose once, fold the attention scale into the q columns, zero-pad
    W_out / b_out to a lane-dense 128-wide output, and cast MXU operands to
    bf16.
    """
    wqkv_t = w_qkv.T.astype(jnp.float32)               # (DIM, 3*INNER)
    wqkv_t = wqkv_t.at[:, :INNER].multiply(SCALE)      # fold scale into q cols

    wout_pad = jnp.zeros((INNER, OUT_PAD), jnp.float32).at[:, :DIM].set(w_out.T)
    bout_pad = jnp.zeros((1, OUT_PAD), jnp.float32).at[0, :DIM].set(b_out)
    bias = jnp.asarray(_BIAS_NP)                       # (BN, BN) f32

    return (wqkv_t.astype(jnp.bfloat16),
            wout_pad.astype(jnp.bfloat16),
            bout_pad,
            bias)


@jax.jit
def attention_pallas(x, params):
    """x: (B, N, DIM) f32; params = prepare_params(...)."""
    wqkv_bf, wout_bf, bout_pad, bias = params
    x_flat = x.reshape(BN, DIM)

    vmem = pltpu.MemorySpace.VMEM
    out_pad = pl.pallas_call(
        attention_kernel,
        out_shape=jax.ShapeDtypeStruct((BN, OUT_PAD), jnp.bfloat16),
        in_specs=[pl.BlockSpec(memory_space=vmem)] * 5,
        out_specs=pl.BlockSpec(memory_space=vmem),
    )(x_flat, wqkv_bf, wout_bf, bout_pad, bias)

    # un-pad lanes, restore dtype and (B, N, DIM) outside the kernel
    return out_pad[:, :DIM].astype(jnp.float32).reshape(B, N, DIM)


# --------------------------- pure-JAX reference ---------------------------
def attention_ref(x, w_qkv, w_out, b_out):
    qkv = x @ w_qkv.T                                   # (B, N, 3*INNER)
    q, k, v = jnp.split(qkv, 3, axis=-1)

    def split_heads(t):                                 # 'b n (h d) -> b h n d'
        return t.reshape(B, N, HEADS, DIM_HEAD).transpose(0, 2, 1, 3)

    q, k, v = map(split_heads, (q, k, v))
    dots = jnp.einsum('bhid,bhjd->bhij', q, k) * SCALE
    attn = jax.nn.softmax(dots, axis=-1)
    out = jnp.einsum('bhij,bhjd->bhid', attn, v)
    out = out.transpose(0, 2, 1, 3).reshape(B, N, INNER)  # 'b h n d -> b n (h d)'
    return out @ w_out.T + b_out                        # to_out Linear (with bias)


# --------------------------------- main -----------------------------------
if __name__ == "__main__":
    key = jax.random.PRNGKey(0)
    kx, kqkv, kout, kb = jax.random.split(key, 4)

    x = jax.random.normal(kx, (B, N, DIM), dtype=jnp.float32)
    # Deterministic synthetic weights, PyTorch nn.Linear shapes: (out, in)
    w_qkv = jax.random.normal(kqkv, (3 * INNER, DIM), dtype=jnp.float32) * 0.05
    w_out = jax.random.normal(kout, (DIM, INNER), dtype=jnp.float32) * 0.05
    b_out = jax.random.normal(kb, (DIM,), dtype=jnp.float32) * 0.05

    # one-time weight preparation (not on the per-call path)
    params = jax.block_until_ready(prepare_params(w_qkv, w_out, b_out))

    out = attention_pallas(x, params)
    out = jax.block_until_ready(out)

    ref = attention_ref(x, w_qkv, w_out, b_out)
    assert out.shape == (B, N, DIM)
    max_err = float(jnp.max(jnp.abs(out - ref)))
    # bf16 matmul operands + bf16 output (f32 accumulation) -> relaxed tolerance
    assert jnp.allclose(out, ref, atol=2e-2, rtol=2e-2), \
        f"mismatch vs reference (max abs err {max_err})"

    print("KERNEL_OK")
</pallas_src>

<mosaic_0001>
module attributes {stable_mosaic.version = 11 : i64} {
  func.func @attention_kernel(%arg0: memref<16x32xf32, #tpu.memory_space<vmem>>, %arg1: memref<32x96xbf16, #tpu.memory_space<vmem>>, %arg2: memref<32x128xbf16, #tpu.memory_space<vmem>>, %arg3: memref<1x128xf32, #tpu.memory_space<vmem>>, %arg4: memref<16x16xf32, #tpu.memory_space<vmem>>, %arg5: memref<16x128xbf16, #tpu.memory_space<vmem>>) attributes {dimension_semantics = [], scalar_prefetch = 0 : i64, scratch_operands = 0 : i64, tpu.core_type = #tpu.core_type<tc>} {
    %c0 = arith.constant 0 : index
    %c0_0 = arith.constant 0 : index
    %0 = vector.load %arg0[%c0, %c0_0] : memref<16x32xf32, #tpu.memory_space<vmem>>, vector<16x32xf32>
    %1 = arith.truncf %0 : vector<16x32xf32> to vector<16x32xbf16>
    %c0_1 = arith.constant 0 : index
    %c0_2 = arith.constant 0 : index
    %2 = vector.load %arg1[%c0_1, %c0_2] : memref<32x96xbf16, #tpu.memory_space<vmem>>, vector<32x96xbf16>
    %cst = arith.constant dense<0.000000e+00> : vector<16x96xf32>
    %3 = tpu.matmul %1, %2, %cst {dimension_numbers = #tpu.dot_dimension_numbers<[1], [0], [0], [1], [0, 0, 1, 1], [], []>} : vector<16x32xbf16>, vector<32x96xbf16>, vector<16x96xf32> -> vector<16x96xf32>
    %4 = arith.truncf %3 : vector<16x96xf32> to vector<16x96xbf16>
    %c0_3 = arith.constant 0 : index
    %c0_4 = arith.constant 0 : index
    %5 = vector.load %arg4[%c0_3, %c0_4] : memref<16x16xf32, #tpu.memory_space<vmem>>, vector<16x16xf32>
    %6 = vector.extract_strided_slice %4 {offsets = [0, 0], sizes = [16, 16], strides = [1, 1]} : vector<16x96xbf16> to vector<16x16xbf16>
    %7 = vector.extract_strided_slice %4 {offsets = [0, 32], sizes = [16, 16], strides = [1, 1]} : vector<16x96xbf16> to vector<16x16xbf16>
    %8 = vector.extract_strided_slice %4 {offsets = [0, 64], sizes = [16, 16], strides = [1, 1]} : vector<16x96xbf16> to vector<16x16xbf16>
    %cst_5 = arith.constant dense<0.000000e+00> : vector<16x16xf32>
    %9 = tpu.matmul %6, %7, %cst_5 {dimension_numbers = #tpu.dot_dimension_numbers<[1], [1], [0], [0], [0, 0, 1, 0], [], []>} : vector<16x16xbf16>, vector<16x16xbf16>, vector<16x16xf32> -> vector<16x16xf32>
    %10 = arith.addf %9, %5 : vector<16x16xf32>
    %cst_6 = arith.constant dense<0xFF800000> : vector<16xf32>
    %11 = vector.multi_reduction <maximumf>, %10, %cst_6 [1] : vector<16x16xf32> to vector<16xf32>
    %12 = vector.shape_cast %11 : vector<16xf32> to vector<16x1xf32>
    %13 = vector.broadcast %12 : vector<16x1xf32> to vector<16x16xf32>
    %14 = arith.subf %10, %13 : vector<16x16xf32>
    %15 = math.exp %14 : vector<16x16xf32>
    %cst_7 = arith.constant dense<0.000000e+00> : vector<16xf32>
    %16 = vector.multi_reduction <add>, %15, %cst_7 [1] : vector<16x16xf32> to vector<16xf32>
    %17 = vector.shape_cast %16 : vector<16xf32> to vector<16x1xf32>
    %18 = tpu.reciprocal %17 {approx = true} : vector<16x1xf32> -> vector<16x1xf32>
    %19 = vector.broadcast %18 : vector<16x1xf32> to vector<16x16xf32>
    %20 = arith.mulf %15, %19 : vector<16x16xf32>
    %21 = arith.truncf %20 : vector<16x16xf32> to vector<16x16xbf16>
    %cst_8 = arith.constant dense<0.000000e+00> : vector<16x16xf32>
    %22 = tpu.matmul %21, %8, %cst_8 {dimension_numbers = #tpu.dot_dimension_numbers<[1], [0], [0], [1], [0, 0, 1, 1], [], []>} : vector<16x16xbf16>, vector<16x16xbf16>, vector<16x16xf32> -> vector<16x16xf32>
    %23 = vector.extract_strided_slice %4 {offsets = [0, 16], sizes = [16, 16], strides = [1, 1]} : vector<16x96xbf16> to vector<16x16xbf16>
    %24 = vector.extract_strided_slice %4 {offsets = [0, 48], sizes = [16, 16], strides = [1, 1]} : vector<16x96xbf16> to vector<16x16xbf16>
    %25 = vector.extract_strided_slice %4 {offsets = [0, 80], sizes = [16, 16], strides = [1, 1]} : vector<16x96xbf16> to vector<16x16xbf16>
    %cst_9 = arith.constant dense<0.000000e+00> : vector<16x16xf32>
    %26 = tpu.matmul %23, %24, %cst_9 {dimension_numbers = #tpu.dot_dimension_numbers<[1], [1], [0], [0], [0, 0, 1, 0], [], []>} : vector<16x16xbf16>, vector<16x16xbf16>, vector<16x16xf32> -> vector<16x16xf32>
    %27 = arith.addf %26, %5 : vector<16x16xf32>
    %cst_10 = arith.constant dense<0xFF800000> : vector<16xf32>
    %28 = vector.multi_reduction <maximumf>, %27, %cst_10 [1] : vector<16x16xf32> to vector<16xf32>
    %29 = vector.shape_cast %28 : vector<16xf32> to vector<16x1xf32>
    %30 = vector.broadcast %29 : vector<16x1xf32> to vector<16x16xf32>
    %31 = arith.subf %27, %30 : vector<16x16xf32>
    %32 = math.exp %31 : vector<16x16xf32>
    %cst_11 = arith.constant dense<0.000000e+00> : vector<16xf32>
    %33 = vector.multi_reduction <add>, %32, %cst_11 [1] : vector<16x16xf32> to vector<16xf32>
    %34 = vector.shape_cast %33 : vector<16xf32> to vector<16x1xf32>
    %35 = tpu.reciprocal %34 {approx = true} : vector<16x1xf32> -> vector<16x1xf32>
    %36 = vector.broadcast %35 : vector<16x1xf32> to vector<16x16xf32>
    %37 = arith.mulf %32, %36 : vector<16x16xf32>
    %38 = arith.truncf %37 : vector<16x16xf32> to vector<16x16xbf16>
    %cst_12 = arith.constant dense<0.000000e+00> : vector<16x16xf32>
    %39 = tpu.matmul %38, %25, %cst_12 {dimension_numbers = #tpu.dot_dimension_numbers<[1], [0], [0], [1], [0, 0, 1, 1], [], []>} : vector<16x16xbf16>, vector<16x16xbf16>, vector<16x16xf32> -> vector<16x16xf32>
    %40 = tpu.concatenate %22, %39 in 1 : vector<16x16xf32>, vector<16x16xf32> -> vector<16x32xf32>
    %41 = arith.truncf %40 : vector<16x32xf32> to vector<16x32xbf16>
    %c0_13 = arith.constant 0 : index
    %c0_14 = arith.constant 0 : index
    %42 = vector.load %arg2[%c0_13, %c0_14] : memref<32x128xbf16, #tpu.memory_space<vmem>>, vector<32x128xbf16>
    %cst_15 = arith.constant dense<0.000000e+00> : vector<16x128xf32>
    %43 = tpu.matmul %41, %42, %cst_15 {dimension_numbers = #tpu.dot_dimension_numbers<[1], [0], [0], [1], [0, 0, 1, 1], [], []>} : vector<16x32xbf16>, vector<32x128xbf16>, vector<16x128xf32> -> vector<16x128xf32>
    %c0_16 = arith.constant 0 : index
    %c0_17 = arith.constant 0 : index
    %44 = vector.load %arg3[%c0_16, %c0_17] : memref<1x128xf32, #tpu.memory_space<vmem>>, vector<1x128xf32>
    %45 = vector.broadcast %44 : vector<1x128xf32> to vector<16x128xf32>
    %46 = arith.addf %43, %45 : vector<16x128xf32>
    %47 = arith.truncf %46 : vector<16x128xf32> to vector<16x128xbf16>
    %c0_18 = arith.constant 0 : index
    %c0_19 = arith.constant 0 : index
    %48 = vector.load %arg5[%c0_18, %c0_19] : memref<16x128xbf16, #tpu.memory_space<vmem>>, vector<16x128xbf16>
    tpu.vector_store %arg5[%c0_18, %c0_19], %47 {strides = array<i32>} : memref<16x128xbf16, #tpu.memory_space<vmem>>, vector<16x128xbf16>,
    return
  }
}

</mosaic_0001>

<llo_original>
// kernel: attention_pallas.1
$region0: #{attention_pallas.1}
  #allocation0 [shape = 'u32[]', space=smem, size = 0x4, offset = 0x4, fixed_abs, tag = 'smem constant byte address 0x4 - core index']
  #allocation1 [shape = 'u32[144,128]{1,0:T(1,128)}', space=vmem, size = 0x12000, scoped, tag = 'internal scratch']
  %s0 = inlined_call_operand.hbm [shape: f32[16,32], index: 0, kind: input, shape index: {}]
  %s1 = inlined_call_operand.hbm [shape: bf16[32,96], index: 1, kind: input, shape index: {}]
  %s2 = inlined_call_operand.hbm [shape: bf16[32,128], index: 2, kind: input, shape index: {}]
  %s3 = inlined_call_operand.vmem [shape: f32[1,128], index: 3, kind: input, shape index: {}]
  %s4 = inlined_call_operand.hbm [shape: f32[16,16], index: 4, kind: input, shape index: {}]
  %s5 = inlined_call_operand.vmem [shape: bf16[16,128], index: 5, kind: output, shape index: {}]
  %s6 = sld [smem:[#allocation0]]
  $region46: #{attention_pallas.1} parent=0
    _
  %s8 = ssub.s32 1, %s6
  %s9 = scalar_select 0, %s8, %s6
  $region1: #{attention_pallas.1} parent=0
    #allocation2 [shape = 'u8[8192]{0}', space=vmem, size = 0x2000, scoped, tag = 'input window, operand 0, single buffered']
    #allocation3 [shape = 's32[1]{0}', space=sflag, size = 0x4, scoped, tag = 'scoped memory for attention_pallas.1']
    #allocation4 [shape = 'u8[8192]{0}', space=vmem, size = 0x2000, scoped, tag = 'input window, operand 1, single buffered']
    #allocation5 [shape = 's32[1]{0}', space=sflag, size = 0x4, scoped, tag = 'scoped memory for attention_pallas.1']
    #allocation6 [shape = 'u8[8192]{0}', space=vmem, size = 0x2000, scoped, tag = 'input window, operand 2, single buffered']
    #allocation7 [shape = 'u8[8192]{0}', space=vmem, size = 0x2000, scoped, tag = 'input window, operand 4, single buffered']
    #allocation8 [shape = 's32[1]{0}', space=sflag, size = 0x4, scoped, tag = 'scoped memory for attention_pallas.1']
    %10 = vsyncpa [#allocation3], 0
    %11 = vsyncpa [#allocation5], 0
    %12 = vsyncpa [#allocation8], 0
    // Predicated region
    $region2: #{attention_pallas.1} parent=1 // pred_check
      _
    $region3: #{attention_pallas.1} parent=1 // pred_check_branch
      %14 = sbr.rel (0) target = $region5
    $region4: #{attention_pallas.1} parent=1 // pred_region
      %s16 = ssub.s32 256, 256
      %17 = vsyncadd [#allocation3], %s16
      %s18 = sshll.u32 [#allocation2], 4
      %s19 = int_to_ptr.vmem [resolvable:$true] %s18
      %24 = dma.hbm_to_vmem [thread:$0]  %s0, 256, %s19, [#allocation3], 128, 128, 8
    $region5: #{attention_pallas.1} parent=1 // pred_fallthru
      _
    // Predicated region
    $region6: #{attention_pallas.1} parent=1 // pred_check
      _
    $region7: #{attention_pallas.1} parent=1 // pred_check_branch
      %26 = sbr.rel (0) target = $region9
    $region8: #{attention_pallas.1} parent=1 // pred_region
      %s28 = ssub.s32 256, 256
      %29 = vsyncadd [#allocation5], %s28
      %s30 = sshll.u32 [#allocation4], 4
      %s31 = int_to_ptr.vmem [resolvable:$true] %s30
      %36 = dma.hbm_to_vmem [thread:$0]  %s1, 256, %s31, [#allocation5], 64, 64, 4
    $region9: #{attention_pallas.1} parent=1 // pred_fallthru
      _
    // Predicated region
    $region10: #{attention_pallas.1} parent=1 // pred_check
      _
    $region11: #{attention_pallas.1} parent=1 // pred_check_branch
      %38 = sbr.rel (0) target = $region13
    $region12: #{attention_pallas.1} parent=1 // pred_region
      %s40 = ssub.s32 256, 256
      %41 = vsyncadd [#allocation5], %s40
      %s42 = sshll.u32 [#allocation6], 4
      %s43 = int_to_ptr.vmem [resolvable:$true] %s42
      %48 = dma.hbm_to_vmem [thread:$0]  %s2, 256, %s43, [#allocation5], 64, 64, 4
    $region13: #{attention_pallas.1} parent=1 // pred_fallthru
      _
    // Predicated region
    $region14: #{attention_pallas.1} parent=1 // pred_check
      _
    $region15: #{attention_pallas.1} parent=1 // pred_check_branch
      %50 = sbr.rel (0) target = $region17
    $region16: #{attention_pallas.1} parent=1 // pred_region
      _
    $region17: #{attention_pallas.1} parent=1 // pred_fallthru
      _
    // Predicated region
    $region18: #{attention_pallas.1} parent=1 // pred_check
      _
    $region19: #{attention_pallas.1} parent=1 // pred_check_branch
      %52 = sbr.rel (0) target = $region21
    $region20: #{attention_pallas.1} parent=1 // pred_region
      %s54 = ssub.s32 256, 256
      %55 = vsyncadd [#allocation8], %s54
      %s56 = sshll.u32 [#allocation7], 4
      %s57 = int_to_ptr.vmem [resolvable:$true] %s56
      %62 = dma.hbm_to_vmem [thread:$0]  %s4, 256, %s57, [#allocation8], 128, 128, 8
    $region21: #{attention_pallas.1} parent=1 // pred_fallthru
      _
    // Predicated region
    $region22: #{attention_pallas.1} parent=1 // pred_check
      _
    $region23: #{attention_pallas.1} parent=1 // pred_check_branch
      %64 = sbr.rel (0) target = $region25
    $region24: #{attention_pallas.1} parent=1 // pred_region
      %65 = dma.done [#allocation3], 256
    $region25: #{attention_pallas.1} parent=1 // pred_fallthru
      _
    // Predicated region
    $region26: #{attention_pallas.1} parent=1 // pred_check
      _
    $region27: #{attention_pallas.1} parent=1 // pred_check_branch
      %67 = sbr.rel (0) target = $region29
    $region28: #{attention_pallas.1} parent=1 // pred_region
      %68 = dma.done [#allocation5], 256
    $region29: #{attention_pallas.1} parent=1 // pred_fallthru
      _
    // Predicated region
    $region30: #{attention_pallas.1} parent=1 // pred_check
      _
    $region31: #{attention_pallas.1} parent=1 // pred_check_branch
      %70 = sbr.rel (0) target = $region33
    $region32: #{attention_pallas.1} parent=1 // pred_region
      %71 = dma.done [#allocation5], 256
    $region33: #{attention_pallas.1} parent=1 // pred_fallthru
      _
    // Predicated region
    $region34: #{attention_pallas.1} parent=1 // pred_check
      _
    $region35: #{attention_pallas.1} parent=1 // pred_check_branch
      %73 = sbr.rel (0) target = $region37
    $region36: #{attention_pallas.1} parent=1 // pred_region
      %74 = dma.done [#allocation8], 256
    $region37: #{attention_pallas.1} parent=1 // pred_fallthru
      _
    %v76 = vld [vmem:[#allocation2] sm:$0xff]
    %v77 = vld [vmem:[#allocation2 + $0x8] sm:$0xff]
    %v78 = vpack.c.bf16 %v77, %v76
    %v79 = vld [vmem:[#allocation4] sm:$0xf]
    %v80 = vld [vmem:[#allocation4 + $0x4] sm:$0xf]
    %v81 = vld [vmem:[#allocation4 + $0x8] sm:$0xf]
    %v82 = vld [vmem:[#allocation4 + $0xc] sm:$0xf]
    %v87 = vunpack.c.l.b16 %v79
    %v88 = vunpack.c.l.b16 %v80
    %v89 = vunpack.c.l.b16 %v81
    %v90 = vunpack.c.l.b16 %v82
    %v91 = vpack.c.b16 %v88, %v87
    %v92 = vpack.c.b16 %v90, %v89
    %vm95 = vcmask 261120
    %v97 = vsel %vm95, %v78, 0
    %99 = vmatprep.subr.bf16.mxu0 0
    %100 = vmatpush1.bf16.msra.mxu0 0
    %101 = vmatprep.subr.bf16.mxu0 0
    %102 = vmatpush1.bf16.msra.mxu0 0
    %103 = vmatprep.subr.bf16.mxu0 0
    %104 = vmatpush1.bf16.msra.mxu0 0
    %105 = vmatprep.subr.bf16.mxu0 0
    %106 = vmatpush1.bf16.msra.mxu0 0
    %107 = vmatprep.subr.bf16.mxu0 0
    %108 = vmatpush1.bf16.msra.mxu0 0
    %109 = vmatprep.subr.bf16.mxu0 0
    %110 = vmatpush1.bf16.msra.mxu0 0
    %111 = vmatprep.subr.bf16.mxu0 0
    %112 = vmatpush1.bf16.msra.mxu0 %v92
    %113 = vmatprep.subr.bf16.mxu0 0
    %114 = vmatpush1.bf16.msra.mxu0 %v91
    %115 = vmatprep.subr.bf16.mxu0 0
    %116 = vmatpush2.bf16.msra.mxu0 0
    %117 = vmatprep.subr.bf16.mxu0 0
    %118 = vmatpush2.bf16.msra.mxu0 0
    %119 = vmatprep.subr.bf16.mxu0 0
    %120 = vmatpush2.bf16.msra.mxu0 0
    %121 = vmatprep.subr.bf16.mxu0 0
    %122 = vmatpush2.bf16.msra.mxu0 0
    %123 = vmatprep.subr.bf16.mxu0 0
    %124 = vmatpush2.bf16.msra.mxu0 0
    %125 = vmatprep.subr.bf16.mxu0 0
    %126 = vmatpush2.bf16.msra.mxu0 0
    %127 = vmatprep.subr.bf16.mxu0 0
    %128 = vmatpush2.bf16.msra.mxu0 0
    %129 = vmatprep.subr.bf16.mxu0 0
    %130 = vmatpush2.bf16.msra.mxu0 0
    %131 = vmatprep.mubr.bf16.mxu0 0
    %132 = vmatmul.mubr.bf16.gmra.mxu0 %v97
    %v133 = vpop.f32.mrf.mxu0
    %v134 = vadd.f32 0.0, %v133
    %v135 = vpop.f32.mrf.mxu0
    %v136 = vpop.f32.mrf.mxu0
    %v137 = vadd.f32 0.0, %v136
    %v138 = vpop.f32.mrf.mxu0
    %139 = vdwg.mxu0
    %v140 = vpack.c.bf16 %v137, %v134
    %v141 = vld [vmem:[#allocation7] sm:$0xff]
    %v142 = vld [vmem:[#allocation7 + $0x8] sm:$0xff]
    %144 = vrot.lane.b32.xlu0 %v140, 96
    %v145 = vpop.permute.xlu0 %144
    %vm146 = vcmask 130048
    %v148 = vsel %vm146, %v140, 0
    %v151 = vsel %vm146, %v145, 0
    %153 = vmatprep.subr.bf16.mxu0 0
    %154 = vmatpush1.bf16.xpose.msra.mxu0 0
    %155 = vmatprep.subr.bf16.mxu0 0
    %156 = vmatpush1.bf16.xpose.msra.mxu0 0
    %157 = vmatprep.subr.bf16.mxu0 0
    %158 = vmatpush1.bf16.xpose.msra.mxu0 0
    %159 = vmatprep.subr.bf16.mxu0 0
    %160 = vmatpush1.bf16.xpose.msra.mxu0 0
    %161 = vmatprep.subr.bf16.mxu0 0
    %162 = vmatpush1.bf16.xpose.msra.mxu0 0
    %163 = vmatprep.subr.bf16.mxu0 0
    %164 = vmatpush1.bf16.xpose.msra.mxu0 0
    %165 = vmatprep.subr.bf16.mxu0 0
    %166 = vmatpush1.bf16.xpose.msra.mxu0 0
    %167 = vmatprep.subr.bf16.mxu0 0
    %168 = vmatpush1.bf16.xpose.msra.mxu0 %v151
    %169 = vmatprep.subr.bf16.mxu0 0
    %170 = vmatpush2.bf16.xpose.msra.mxu0 0
    %171 = vmatprep.subr.bf16.mxu0 0
    %172 = vmatpush2.bf16.xpose.msra.mxu0 0
    %173 = vmatprep.subr.bf16.mxu0 0
    %174 = vmatpush2.bf16.xpose.msra.mxu0 0
    %175 = vmatprep.subr.bf16.mxu0 0
    %176 = vmatpush2.bf16.xpose.msra.mxu0 0
    %177 = vmatprep.subr.bf16.mxu0 0
    %178 = vmatpush2.bf16.xpose.msra.mxu0 0
    %179 = vmatprep.subr.bf16.mxu0 0
    %180 = vmatpush2.bf16.xpose.msra.mxu0 0
    %181 = vmatprep.subr.bf16.mxu0 0
    %182 = vmatpush2.bf16.xpose.msra.mxu0 0
    %183 = vmatprep.subr.bf16.mxu0 0
    %184 = vmatpush2.bf16.xpose.msra.mxu0 0
    %185 = vmatprep.mubr.bf16.mxu0 0
    %186 = vmatmul.mubr.bf16.gmra.mxu0 %v148
    %v187 = vpop.f32.mrf.mxu0
    %v188 = vadd.f32 %v141, %v187
    %v189 = vpop.f32.mrf.mxu0
    %v190 = vpop.f32.mrf.mxu0
    %v191 = vadd.f32 %v142, %v190
    %v192 = vpop.f32.mrf.mxu0
    %193 = vdwg.mxu0
    %v194 = vsel %vm146, %v188, -inf
    %195 = vmax.xlane.f32.xlu0 %v194
    %v196 = vpop.xlane.xlu0 %195
    %v197 = vsel %vm146, %v191, -inf
    %198 = vmax.xlane.f32.xlu0 %v197
    %v199 = vpop.xlane.xlu0 %198
    %v200 = vsub.f32 %v188, %v196
    %v201 = vsub.f32 %v191, %v199
    %v202 = vmul.f32 %v200, 1.442695
    %v203 = vpow.pop %v202
    %v204 = vmul.f32 %v201, 1.442695
    %v205 = vpow.pop %v204
    %v206 = vsel %vm146, %v203, 0.0
    %207 = vadd.xlane.f32.xlu0 %v206
    %v208 = vpop.xlane.xlu0 %207
    %v209 = vsel %vm146, %v205, 0.0
    %210 = vadd.xlane.f32.xlu0 %v209
    %v211 = vpop.xlane.xlu0 %210
    %v212 = vrcp.pop %v208
    %v213 = vrcp.pop %v211
    %v214 = vmul.f32 %v203, %v212
    %v215 = vmul.f32 %v205, %v213
    %v216 = vpack.c.bf16 %v215, %v214
    %217 = vrot.lane.b32.xlu0 %v140, 64
    %v218 = vpop.permute.xlu0 %217
    %v221 = vsel %vm146, %v216, 0
    %223 = vmatprep.subr.bf16.mxu0 0
    %224 = vmatpush1.bf16.msra.mxu0 0
    %225 = vmatprep.subr.bf16.mxu0 0
    %226 = vmatpush1.bf16.msra.mxu0 0
    %227 = vmatprep.subr.bf16.mxu0 0
    %228 = vmatpush1.bf16.msra.mxu0 0
    %229 = vmatprep.subr.bf16.mxu0 0
    %230 = vmatpush1.bf16.msra.mxu0 0
    %231 = vmatprep.subr.bf16.mxu0 0
    %232 = vmatpush1.bf16.msra.mxu0 0
    %233 = vmatprep.subr.bf16.mxu0 0
    %234 = vmatpush1.bf16.msra.mxu0 0
    %235 = vmatprep.subr.bf16.mxu0 0
    %236 = vmatpush1.bf16.msra.mxu0 0
    %237 = vmatprep.subr.bf16.mxu0 0
    %238 = vmatpush1.bf16.msra.mxu0 %v218
    %239 = vmatprep.subr.bf16.mxu0 0
    %240 = vmatpush2.bf16.msra.mxu0 0
    %241 = vmatprep.subr.bf16.mxu0 0
    %242 = vmatpush2.bf16.msra.mxu0 0
    %243 = vmatprep.subr.bf16.mxu0 0
    %244 = vmatpush2.bf16.msra.mxu0 0
    %245 = vmatprep.subr.bf16.mxu0 0
    %246 = vmatpush2.bf16.msra.mxu0 0
    %247 = vmatprep.subr.bf16.mxu0 0
    %248 = vmatpush2.bf16.msra.mxu0 0
    %249 = vmatprep.subr.bf16.mxu0 0
    %250 = vmatpush2.bf16.msra.mxu0 0
    %251 = vmatprep.subr.bf16.mxu0 0
    %252 = vmatpush2.bf16.msra.mxu0 0
    %253 = vmatprep.subr.bf16.mxu0 0
    %254 = vmatpush2.bf16.msra.mxu0 0
    %255 = vmatprep.mubr.bf16.mxu0 0
    %256 = vmatmul.mubr.bf16.gmra.mxu0 %v221
    %v257 = vpop.f32.mrf.mxu0
    %v258 = vadd.f32 0.0, %v257
    %v259 = vpop.f32.mrf.mxu0
    %v260 = vpop.f32.mrf.mxu0
    %v261 = vadd.f32 0.0, %v260
    %v262 = vpop.f32.mrf.mxu0
    %263 = vdwg.mxu0
    %264 = vrot.lane.b32.xlu0 %v140, 112
    %v265 = vpop.permute.xlu0 %264
    %266 = vrot.lane.b32.xlu0 %v140, 80
    %v267 = vpop.permute.xlu0 %266
    %v269 = vsel %vm146, %v265, 0
    %v272 = vsel %vm146, %v267, 0
    %274 = vmatprep.subr.bf16.mxu0 0
    %275 = vmatpush1.bf16.xpose.msra.mxu0 0
    %276 = vmatprep.subr.bf16.mxu0 0
    %277 = vmatpush1.bf16.xpose.msra.mxu0 0
    %278 = vmatprep.subr.bf16.mxu0 0
    %279 = vmatpush1.bf16.xpose.msra.mxu0 0
    %280 = vmatprep.subr.bf16.mxu0 0
    %281 = vmatpush1.bf16.xpose.msra.mxu0 0
    %282 = vmatprep.subr.bf16.mxu0 0
    %283 = vmatpush1.bf16.xpose.msra.mxu0 0
    %284 = vmatprep.subr.bf16.mxu0 0
    %285 = vmatpush1.bf16.xpose.msra.mxu0 0
    %286 = vmatprep.subr.bf16.mxu0 0
    %287 = vmatpush1.bf16.xpose.msra.mxu0 0
    %288 = vmatprep.subr.bf16.mxu0 0
    %289 = vmatpush1.bf16.xpose.msra.mxu0 %v272
    %290 = vmatprep.subr.bf16.mxu0 0
    %291 = vmatpush2.bf16.xpose.msra.mxu0 0
    %292 = vmatprep.subr.bf16.mxu0 0
    %293 = vmatpush2.bf16.xpose.msra.mxu0 0
    %294 = vmatprep.subr.bf16.mxu0 0
    %295 = vmatpush2.bf16.xpose.msra.mxu0 0
    %296 = vmatprep.subr.bf16.mxu0 0
    %297 = vmatpush2.bf16.xpose.msra.mxu0 0
    %298 = vmatprep.subr.bf16.mxu0 0
    %299 = vmatpush2.bf16.xpose.msra.mxu0 0
    %300 = vmatprep.subr.bf16.mxu0 0
    %301 = vmatpush2.bf16.xpose.msra.mxu0 0
    %302 = vmatprep.subr.bf16.mxu0 0
    %303 = vmatpush2.bf16.xpose.msra.mxu0 0
    %304 = vmatprep.subr.bf16.mxu0 0
    %305 = vmatpush2.bf16.xpose.msra.mxu0 0
    %306 = vmatprep.mubr.bf16.mxu0 0
    %307 = vmatmul.mubr.bf16.gmra.mxu0 %v269
    %v308 = vpop.f32.mrf.mxu0
    %v309 = vadd.f32 %v141, %v308
    %v310 = vpop.f32.mrf.mxu0
    %v311 = vpop.f32.mrf.mxu0
    %v312 = vadd.f32 %v142, %v311
    %v313 = vpop.f32.mrf.mxu0
    %314 = vdwg.mxu0
    %v315 = vsel %vm146, %v309, -inf
    %316 = vmax.xlane.f32.xlu0 %v315
    %v317 = vpop.xlane.xlu0 %316
    %v318 = vsel %vm146, %v312, -inf
    %319 = vmax.xlane.f32.xlu0 %v318
    %v320 = vpop.xlane.xlu0 %319
    %v321 = vsub.f32 %v309, %v317
    %v322 = vsub.f32 %v312, %v320
    %v323 = vmul.f32 %v321, 1.442695
    %v324 = vpow.pop %v323
    %v325 = vmul.f32 %v322, 1.442695
    %v326 = vpow.pop %v325
    %v327 = vsel %vm146, %v324, 0.0
    %328 = vadd.xlane.f32.xlu0 %v327
    %v329 = vpop.xlane.xlu0 %328
    %v330 = vsel %vm146, %v326, 0.0
    %331 = vadd.xlane.f32.xlu0 %v330
    %v332 = vpop.xlane.xlu0 %331
    %v333 = vrcp.pop %v329
    %v334 = vrcp.pop %v332
    %v335 = vmul.f32 %v324, %v333
    %v336 = vmul.f32 %v326, %v334
    %v337 = vpack.c.bf16 %v336, %v335
    %338 = vrot.lane.b32.xlu0 %v140, 48
    %v339 = vpop.permute.xlu0 %338
    %v342 = vsel %vm146, %v337, 0
    %344 = vmatprep.subr.bf16.mxu0 0
    %345 = vmatpush1.bf16.msra.mxu0 0
    %346 = vmatprep.subr.bf16.mxu0 0
    %347 = vmatpush1.bf16.msra.mxu0 0
    %348 = vmatprep.subr.bf16.mxu0 0
    %349 = vmatpush1.bf16.msra.mxu0 0
    %350 = vmatprep.subr.bf16.mxu0 0
    %351 = vmatpush1.bf16.msra.mxu0 0
    %352 = vmatprep.subr.bf16.mxu0 0
    %353 = vmatpush1.bf16.msra.mxu0 0
    %354 = vmatprep.subr.bf16.mxu0 0
    %355 = vmatpush1.bf16.msra.mxu0 0
    %356 = vmatprep.subr.bf16.mxu0 0
    %357 = vmatpush1.bf16.msra.mxu0 0
    %358 = vmatprep.subr.bf16.mxu0 0
    %359 = vmatpush1.bf16.msra.mxu0 %v339
    %360 = vmatprep.subr.bf16.mxu0 0
    %361 = vmatpush2.bf16.msra.mxu0 0
    %362 = vmatprep.subr.bf16.mxu0 0
    %363 = vmatpush2.bf16.msra.mxu0 0
    %364 = vmatprep.subr.bf16.mxu0 0
    %365 = vmatpush2.bf16.msra.mxu0 0
    %366 = vmatprep.subr.bf16.mxu0 0
    %367 = vmatpush2.bf16.msra.mxu0 0
    %368 = vmatprep.subr.bf16.mxu0 0
    %369 = vmatpush2.bf16.msra.mxu0 0
    %370 = vmatprep.subr.bf16.mxu0 0
    %371 = vmatpush2.bf16.msra.mxu0 0
    %372 = vmatprep.subr.bf16.mxu0 0
    %373 = vmatpush2.bf16.msra.mxu0 0
    %374 = vmatprep.subr.bf16.mxu0 0
    %375 = vmatpush2.bf16.msra.mxu0 0
    %376 = vmatprep.mubr.bf16.mxu0 0
    %377 = vmatmul.mubr.bf16.gmra.mxu0 %v342
    %v378 = vpop.f32.mrf.mxu0
    %v379 = vadd.f32 0.0, %v378
    %v380 = vpop.f32.mrf.mxu0
    %v381 = vpop.f32.mrf.mxu0
    %v382 = vadd.f32 0.0, %v381
    %v383 = vpop.f32.mrf.mxu0
    %384 = vdwg.mxu0
    %387 = vrot.lane.b32.xlu0 %v379, 16
    %v388 = vpop.permute.xlu0 %387
    %389 = vrot.lane.b32.xlu0 %v382, 16
    %v390 = vpop.permute.xlu0 %389
    %v393 = vsel %vm146, %v258, %v388
    %v394 = vsel %vm146, %v261, %v390
    %v395 = vpack.c.bf16 %v394, %v393
    %v396 = vld [vmem:[#allocation6] sm:$0xf]
    %v397 = vld [vmem:[#allocation6 + $0x4] sm:$0xf]
    %v398 = vld [vmem:[#allocation6 + $0x8] sm:$0xf]
    %v399 = vld [vmem:[#allocation6 + $0xc] sm:$0xf]
    %v400 = vld [vmem:[%s3] sm:$0x1]
    %v402 = vlaneseq
    %v403 = vshrl.u32 %v402, 7
    %v404 = vsub.s32 0, %v403
    %v405 = vrot.slane %v400, %v404
    %v411 = vunpack.c.l.b16 %v396
    %v412 = vunpack.c.l.b16 %v397
    %v413 = vunpack.c.l.b16 %v398
    %v414 = vunpack.c.l.b16 %v399
    %v415 = vpack.c.b16 %v412, %v411
    %v416 = vpack.c.b16 %v414, %v413
    %v420 = vsel %vm95, %v395, 0
    %422 = vmatprep.subr.bf16.mxu0 0
    %423 = vmatpush1.bf16.msra.mxu0 0
    %424 = vmatprep.subr.bf16.mxu0 0
    %425 = vmatpush1.bf16.msra.mxu0 0
    %426 = vmatprep.subr.bf16.mxu0 0
    %427 = vmatpush1.bf16.msra.mxu0 0
    %428 = vmatprep.subr.bf16.mxu0 0
    %429 = vmatpush1.bf16.msra.mxu0 0
    %430 = vmatprep.subr.bf16.mxu0 0
    %431 = vmatpush1.bf16.msra.mxu0 0
    %432 = vmatprep.subr.bf16.mxu0 0
    %433 = vmatpush1.bf16.msra.mxu0 0
    %434 = vmatprep.subr.bf16.mxu0 0
    %435 = vmatpush1.bf16.msra.mxu0 %v416
    %436 = vmatprep.subr.bf16.mxu0 0
    %437 = vmatpush1.bf16.msra.mxu0 %v415
    %438 = vmatprep.subr.bf16.mxu0 0
    %439 = vmatpush2.bf16.msra.mxu0 0
    %440 = vmatprep.subr.bf16.mxu0 0
    %441 = vmatpush2.bf16.msra.mxu0 0
    %442 = vmatprep.subr.bf16.mxu0 0
    %443 = vmatpush2.bf16.msra.mxu0 0
    %444 = vmatprep.subr.bf16.mxu0 0
    %445 = vmatpush2.bf16.msra.mxu0 0
    %446 = vmatprep.subr.bf16.mxu0 0
    %447 = vmatpush2.bf16.msra.mxu0 0
    %448 = vmatprep.subr.bf16.mxu0 0
    %449 = vmatpush2.bf16.msra.mxu0 0
    %450 = vmatprep.subr.bf16.mxu0 0
    %451 = vmatpush2.bf16.msra.mxu0 0
    %452 = vmatprep.subr.bf16.mxu0 0
    %453 = vmatpush2.bf16.msra.mxu0 0
    %454 = vmatprep.mubr.bf16.mxu0 0
    %455 = vmatmul.mubr.bf16.gmra.mxu0 %v420
    %v456 = vpop.f32.mrf.mxu0
    %v457 = vadd.f32 %v405, %v456
    %v458 = vpop.f32.mrf.mxu0
    %v459 = vpop.f32.mrf.mxu0
    %v460 = vadd.f32 %v405, %v459
    %v461 = vpop.f32.mrf.mxu0
    %462 = vdwg.mxu0
    %v463 = vpack.c.bf16 %v460, %v457
    %v465 = vunpack.c.l.b16 %v463
    %v466 = vunpack.c.h.b16 %v463
    %v467 = vpack.c.b16 %v465, %v465
    %v468 = vpack.c.b16 %v466, %v466
    %471 = vst [vmem:[%s5] sm:$0xf] %v467
    %472 = vst [vmem:[%s5 + $0x4] sm:$0xf] %v468
    // Predicated region
    $region38: #{attention_pallas.1} parent=1 // pred_check
      _
    $region39: #{attention_pallas.1} parent=1 // pred_check_branch
      %474 = sbr.rel (0) target = $region41
    $region40: #{attention_pallas.1} parent=1 // pred_region
      _
    $region41: #{attention_pallas.1} parent=1 // pred_fallthru
      _
    // Predicated region
    $region42: #{attention_pallas.1} parent=1 // pred_check
      _
    $region43: #{attention_pallas.1} parent=1 // pred_check_branch
      %476 = sbr.rel (0) target = $region45
    $region44: #{attention_pallas.1} parent=1 // pred_region
      _
    $region45: #{attention_pallas.1} parent=1 // pred_fallthru
      _
    %477 = vsyncpa [#allocation3], 1
    %478 = vsyncpa [#allocation5], 1
    %479 = vsyncpa [#allocation8], 1

</llo_original>
